<compile_context>
chip_gen: v6e
topology: v6e:2x2x1
jax: 0.10.0
libtpu: 0.0.40
codegen_flags: <defaults>
</compile_context>

<pallas_src>
import functools

import jax
import jax.numpy as jnp
from jax import lax
from jax.experimental import pallas as pl
from jax.experimental.pallas import tpu as pltpu

LANE = 128


def _round_up(x, m):
    return (x + m - 1) // m * m


def airl_tile_kernel(obs_ref, act_ref, logq_ref, tgt_ref,
                     w1o_ref, w1a_ref, b1_ref, w2_ref, b2_ref, w3_ref, b3_ref,
                     out_ref, *, n_rows, tm):
    # ---- f(s, a): MLP (obs_dim + act_dim -> Hp -> Hp -> 1), ReLU hidden ----
    # Concat-free first layer: x @ W1 == obs @ W1[:obs_dim] + act @ W1[obs_dim:]
    h1 = (jnp.dot(obs_ref[...], w1o_ref[...], preferred_element_type=jnp.float32)
          + jnp.dot(act_ref[...], w1a_ref[...], preferred_element_type=jnp.float32)
          + b1_ref[...])
    h1 = jnp.maximum(h1, 0.0)                                          # (tm, Hp) f32

    h2 = jnp.dot(h1.astype(w2_ref.dtype), w2_ref[...],
                 preferred_element_type=jnp.float32) + b2_ref[...]
    h2 = jnp.maximum(h2, 0.0)                                          # (tm, Hp) f32

    # 1-wide output layer on the VPU/XLU (mul + lane reduce), not a 1-col MXU matmul.
    log_p = jnp.sum(h2 * w3_ref[...], axis=-1, keepdims=True) + b3_ref[...]   # (tm, 1)

    log_q = logq_ref[...]                                              # (tm, 1)
    tgt = tgt_ref[...]                                                 # (tm, 1)

    # ---- numerically-stable logsumexp over the pair (log_p, log_q) ----
    m = jnp.maximum(log_p, log_q)
    log_pq = m + jnp.log(jnp.exp(log_p - m) + jnp.exp(log_q - m))

    # ---- AIRL discriminator binary-CE style loss (per row) ----
    total = tgt * (log_p - log_pq) + (1.0 - tgt) * (log_q - log_pq)    # (tm, 1)

    # Mask rows that were added by batch padding (true batch size baked in).
    row = pl.program_id(0) * tm + lax.broadcasted_iota(jnp.int32, (tm, 1), 0)
    total = jnp.where(row < n_rows, total, 0.0)

    partial = jnp.sum(total)
    # Lane-dense (1, 8, 128) partial-sum block; wrapper reads [:, 0, 0].
    out_ref[...] = jnp.full(out_ref.shape, partial, dtype=out_ref.dtype)


def airl_discriminator_loss(obs, act, log_q_tau, target, params, *, tm=1024):
    """obs: (N, obs_dim), act: (N, act_dim), log_q_tau/target: (N, 1)."""
    w1, b1, w2, b2, w3, b3 = params
    n, obs_dim = obs.shape
    act_dim = act.shape[1]
    h = w1.shape[1]
    hp = _round_up(max(h, LANE), LANE)            # lane-dense hidden width

    # ---- zero-pad hidden dims to the lane width (numerically a no-op) ----
    w1p = jnp.zeros((obs_dim + act_dim, hp), jnp.float32).at[:, :h].set(w1)
    b1p = jnp.zeros((1, hp), jnp.float32).at[:, :h].set(b1)
    w2p = jnp.zeros((hp, hp), jnp.float32).at[:h, :h].set(w2)
    b2p = jnp.zeros((1, hp), jnp.float32).at[:, :h].set(b2)
    w3p = jnp.zeros((1, hp), jnp.float32).at[:, :h].set(w3.reshape(1, h))
    b3p = jnp.asarray(b3, jnp.float32).reshape(1, 1)

    # bf16 for the streamed activations + MXU weights (f32 accumulation inside).
    w1o = w1p[:obs_dim].astype(jnp.bfloat16)
    w1a = w1p[obs_dim:].astype(jnp.bfloat16)
    w2b = w2p.astype(jnp.bfloat16)
    obs_b = obs.astype(jnp.bfloat16)
    act_b = act.astype(jnp.bfloat16)
    logq = log_q_tau.astype(jnp.float32).reshape(n, 1)
    tgt = target.astype(jnp.float32).reshape(n, 1)

    # ---- batch tiling (TM rows per grid step; sized well under 32 MiB VMEM) ----
    tm = max(8, min(_round_up(tm, 8), _round_up(n, 8)))
    n_pad = _round_up(n, tm)
    num_tiles = n_pad // tm
    if n_pad != n:
        pad = n_pad - n
        obs_b = jnp.pad(obs_b, ((0, pad), (0, 0)))
        act_b = jnp.pad(act_b, ((0, pad), (0, 0)))
        logq = jnp.pad(logq, ((0, pad), (0, 0)))
        tgt = jnp.pad(tgt, ((0, pad), (0, 0)))

    kernel = functools.partial(airl_tile_kernel, n_rows=n, tm=tm)

    def row_spec(d):
        return pl.BlockSpec((tm, d), lambda i: (i, 0))

    def const_spec(shape):
        return pl.BlockSpec(shape, lambda i: (0, 0))

    grid_spec = pltpu.PrefetchScalarGridSpec(
        num_scalar_prefetch=0,
        grid=(num_tiles,),
        in_specs=[
            row_spec(obs_dim), row_spec(act_dim), row_spec(1), row_spec(1),
            const_spec((obs_dim, hp)), const_spec((act_dim, hp)),
            const_spec((1, hp)), const_spec((hp, hp)), const_spec((1, hp)),
            const_spec((1, hp)), const_spec((1, 1)),
        ],
        out_specs=pl.BlockSpec((1, 8, LANE), lambda i: (i, 0, 0)),
    )

    d_in = obs_dim + act_dim
    cost = pl.CostEstimate(
        flops=2 * n_pad * (d_in * hp + hp * hp + hp),
        transcendentals=3 * n_pad,
        bytes_accessed=(n_pad * (d_in * 2 + 2 * 4)
                        + (d_in * hp + hp * hp) * 2 + (3 * hp + 1) * 4
                        + num_tiles * 8 * LANE * 4),
    )

    partials = pl.pallas_call(
        kernel,
        out_shape=jax.ShapeDtypeStruct((num_tiles, 8, LANE), jnp.float32),
        grid_spec=grid_spec,
        compiler_params=pltpu.CompilerParams(
            dimension_semantics=("parallel",),     # megacore-shardable on v7x
            vmem_limit_bytes=32 * 1024 * 1024,     # safe on v5e/v6e/v7x scoped VMEM
        ),
        cost_estimate=cost,
    )(obs_b, act_b, logq, tgt, w1o, w1a, b1p, w2b, b2p, w3p, b3p)

    # Final mean + negation (divide by the *true* N) done in the wrapper.
    return -(jnp.sum(partials[:, 0, 0]) / n)


def init_params(key, obs_dim, act_dim, hidden_sizes=(32, 32)):
    """Deterministic init mimicking nn.Linear default (uniform +-1/sqrt(fan_in))."""
    sizes = [obs_dim + act_dim] + list(hidden_sizes) + [1]
    params = []
    for i in range(len(sizes) - 1):
        fan_in, fan_out = sizes[i], sizes[i + 1]
        key, kw, kb = jax.random.split(key, 3)
        bound = 1.0 / jnp.sqrt(fan_in)
        w = jax.random.uniform(kw, (fan_in, fan_out), jnp.float32, -bound, bound)
        b = jax.random.uniform(kb, (1, fan_out), jnp.float32, -bound, bound)
        params += [w, b]
    return tuple(params)


if __name__ == "__main__":
    obs_dim, act_dim = 16, 4
    N = 8  # twice the batch size (fake samples first, real last)

    key = jax.random.PRNGKey(0)
    k_obs, k_act, k_logq, k_params = jax.random.split(key, 4)

    obs = jax.random.normal(k_obs, (N, obs_dim), jnp.float32)
    act = jax.random.normal(k_act, (N, act_dim), jnp.float32)
    log_q_tau = jax.random.normal(k_logq, (N, 1), jnp.float32) - 1.0
    target = jnp.concatenate(
        [jnp.zeros((N // 2, 1), jnp.float32), jnp.ones((N // 2, 1), jnp.float32)], axis=0)

    params = init_params(k_params, obs_dim, act_dim, hidden_sizes=(32, 32))

    loss = airl_discriminator_loss(obs, act, log_q_tau, target, params)
    jax.block_until_ready(loss)

    # ---- reference mirroring the kernel's mixed precision (bf16 MXU, f32 tail) ----
    w1, b1, w2, b2, w3, b3 = params
    w1b = w1.astype(jnp.bfloat16)
    w2b = w2.astype(jnp.bfloat16)
    h1 = (jnp.dot(obs.astype(jnp.bfloat16), w1b[:obs_dim],
                  preferred_element_type=jnp.float32)
          + jnp.dot(act.astype(jnp.bfloat16), w1b[obs_dim:],
                    preferred_element_type=jnp.float32) + b1)
    h1 = jnp.maximum(h1, 0.0)
    h2 = jnp.maximum(jnp.dot(h1.astype(jnp.bfloat16), w2b,
                             preferred_element_type=jnp.float32) + b2, 0.0)
    log_p = h2 @ w3 + b3
    log_pq = jax.scipy.special.logsumexp(
        jnp.concatenate([log_p, log_q_tau], 1), axis=1, keepdims=True)
    ref = -jnp.mean(target * (log_p - log_pq) + (1 - target) * (log_q_tau - log_pq))
    assert jnp.allclose(loss, ref, atol=1e-4, rtol=1e-4), (loss, ref)

    # ---- loose sanity check vs the pure-f32 PyTorch-equivalent forward ----
    h1f = jnp.maximum(jnp.concatenate([obs, act], 1) @ w1 + b1, 0.0)
    h2f = jnp.maximum(h1f @ w2 + b2, 0.0)
    log_pf = h2f @ w3 + b3
    log_pqf = jax.scipy.special.logsumexp(
        jnp.concatenate([log_pf, log_q_tau], 1), axis=1, keepdims=True)
    ref_f32 = -jnp.mean(target * (log_pf - log_pqf)
                        + (1 - target) * (log_q_tau - log_pqf))
    assert jnp.allclose(loss, ref_f32, atol=5e-2), (loss, ref_f32)

    print("KERNEL_OK")
</pallas_src>

<mosaic_0001>
module attributes {stable_mosaic.version = 11 : i64} {
  func.func @airl_tile_kernel(%arg0: i32, %arg1: memref<8x16xbf16, #tpu.memory_space<vmem>>, %arg2: memref<8x4xbf16, #tpu.memory_space<vmem>>, %arg3: memref<8x1xf32, #tpu.memory_space<vmem>>, %arg4: memref<8x1xf32, #tpu.memory_space<vmem>>, %arg5: memref<16x128xbf16, #tpu.memory_space<vmem>>, %arg6: memref<4x128xbf16, #tpu.memory_space<vmem>>, %arg7: memref<1x128xf32, #tpu.memory_space<vmem>>, %arg8: memref<128x128xbf16, #tpu.memory_space<vmem>>, %arg9: memref<1x128xf32, #tpu.memory_space<vmem>>, %arg10: memref<1x128xf32, #tpu.memory_space<vmem>>, %arg11: memref<1x1xf32, #tpu.memory_space<vmem>>, %arg12: memref<1x8x128xf32, #tpu.memory_space<vmem>>) attributes {dimension_semantics = [#tpu.dimension_semantics<parallel>], iteration_bounds = array<i64: 1>, scalar_prefetch = 0 : i64, scratch_operands = 0 : i64, tpu.core_type = #tpu.core_type<tc>, window_params = [{transform_indices = @transform_0, window_bounds = array<i64: 8, 16>}, {transform_indices = @transform_1, window_bounds = array<i64: 8, 4>}, {transform_indices = @transform_2, window_bounds = array<i64: 8, 1>}, {transform_indices = @transform_3, window_bounds = array<i64: 8, 1>}, {pipeline_mode = #tpu.pipeline_mode<synchronous>, transform_indices = @transform_4, window_bounds = array<i64: 16, 128>}, {pipeline_mode = #tpu.pipeline_mode<synchronous>, transform_indices = @transform_5, window_bounds = array<i64: 4, 128>}, {pipeline_mode = #tpu.pipeline_mode<synchronous>, transform_indices = @transform_6, window_bounds = array<i64: 1, 128>}, {pipeline_mode = #tpu.pipeline_mode<synchronous>, transform_indices = @transform_7, window_bounds = array<i64: 128, 128>}, {pipeline_mode = #tpu.pipeline_mode<synchronous>, transform_indices = @transform_8, window_bounds = array<i64: 1, 128>}, {pipeline_mode = #tpu.pipeline_mode<synchronous>, transform_indices = @transform_9, window_bounds = array<i64: 1, 128>}, {pipeline_mode = #tpu.pipeline_mode<synchronous>, transform_indices = @transform_10, window_bounds = array<i64: 1, 1>}, {transform_indices = @transform_11, window_bounds = array<i64: 1, 8, 128>}]} {
    %c0 = arith.constant 0 : index
    %c0_0 = arith.constant 0 : index
    %0 = vector.load %arg1[%c0, %c0_0] : memref<8x16xbf16, #tpu.memory_space<vmem>>, vector<8x16xbf16>
    %c0_1 = arith.constant 0 : index
    %c0_2 = arith.constant 0 : index
    %1 = vector.load %arg5[%c0_1, %c0_2] : memref<16x128xbf16, #tpu.memory_space<vmem>>, vector<16x128xbf16>
    %cst = arith.constant dense<0.000000e+00> : vector<8x128xf32>
    %2 = tpu.matmul %0, %1, %cst {dimension_numbers = #tpu.dot_dimension_numbers<[1], [0], [0], [1], [0, 0, 1, 1], [], []>} : vector<8x16xbf16>, vector<16x128xbf16>, vector<8x128xf32> -> vector<8x128xf32>
    %c0_3 = arith.constant 0 : index
    %c0_4 = arith.constant 0 : index
    %3 = vector.load %arg2[%c0_3, %c0_4] : memref<8x4xbf16, #tpu.memory_space<vmem>>, vector<8x4xbf16>
    %c0_5 = arith.constant 0 : index
    %c0_6 = arith.constant 0 : index
    %4 = vector.load %arg6[%c0_5, %c0_6] : memref<4x128xbf16, #tpu.memory_space<vmem>>, vector<4x128xbf16>
    %cst_7 = arith.constant dense<0.000000e+00> : vector<8x128xf32>
    %5 = tpu.matmul %3, %4, %cst_7 {dimension_numbers = #tpu.dot_dimension_numbers<[1], [0], [0], [1], [0, 0, 1, 1], [], []>} : vector<8x4xbf16>, vector<4x128xbf16>, vector<8x128xf32> -> vector<8x128xf32>
    %6 = arith.addf %2, %5 : vector<8x128xf32>
    %c0_8 = arith.constant 0 : index
    %c0_9 = arith.constant 0 : index
    %7 = vector.load %arg7[%c0_8, %c0_9] : memref<1x128xf32, #tpu.memory_space<vmem>>, vector<1x128xf32>
    %8 = vector.broadcast %7 : vector<1x128xf32> to vector<8x128xf32>
    %9 = arith.addf %6, %8 : vector<8x128xf32>
    %cst_10 = arith.constant 0.000000e+00 : f32
    %10 = vector.broadcast %cst_10 : f32 to vector<8x128xf32>
    %11 = arith.maximumf %9, %10 : vector<8x128xf32>
    %12 = arith.truncf %11 : vector<8x128xf32> to vector<8x128xbf16>
    %c0_11 = arith.constant 0 : index
    %c0_12 = arith.constant 0 : index
    %13 = vector.load %arg8[%c0_11, %c0_12] : memref<128x128xbf16, #tpu.memory_space<vmem>>, vector<128x128xbf16>
    %cst_13 = arith.constant dense<0.000000e+00> : vector<8x128xf32>
    %14 = tpu.matmul %12, %13, %cst_13 {dimension_numbers = #tpu.dot_dimension_numbers<[1], [0], [0], [1], [0, 0, 1, 1], [], []>} : vector<8x128xbf16>, vector<128x128xbf16>, vector<8x128xf32> -> vector<8x128xf32>
    %c0_14 = arith.constant 0 : index
    %c0_15 = arith.constant 0 : index
    %15 = vector.load %arg9[%c0_14, %c0_15] : memref<1x128xf32, #tpu.memory_space<vmem>>, vector<1x128xf32>
    %16 = vector.broadcast %15 : vector<1x128xf32> to vector<8x128xf32>
    %17 = arith.addf %14, %16 : vector<8x128xf32>
    %cst_16 = arith.constant 0.000000e+00 : f32
    %18 = vector.broadcast %cst_16 : f32 to vector<8x128xf32>
    %19 = arith.maximumf %17, %18 : vector<8x128xf32>
    %c0_17 = arith.constant 0 : index
    %c0_18 = arith.constant 0 : index
    %20 = vector.load %arg10[%c0_17, %c0_18] : memref<1x128xf32, #tpu.memory_space<vmem>>, vector<1x128xf32>
    %21 = vector.broadcast %20 : vector<1x128xf32> to vector<8x128xf32>
    %22 = arith.mulf %19, %21 : vector<8x128xf32>
    %cst_19 = arith.constant dense<0.000000e+00> : vector<8xf32>
    %23 = vector.multi_reduction <add>, %22, %cst_19 [1] : vector<8x128xf32> to vector<8xf32>
    %24 = vector.shape_cast %23 : vector<8xf32> to vector<8x1xf32>
    %c0_20 = arith.constant 0 : index
    %c0_21 = arith.constant 0 : index
    %25 = vector.load %arg11[%c0_20, %c0_21] : memref<1x1xf32, #tpu.memory_space<vmem>>, vector<1x1xf32>
    %26 = vector.broadcast %25 : vector<1x1xf32> to vector<8x1xf32>
    %27 = arith.addf %24, %26 : vector<8x1xf32>
    %c0_22 = arith.constant 0 : index
    %c0_23 = arith.constant 0 : index
    %28 = vector.load %arg3[%c0_22, %c0_23] : memref<8x1xf32, #tpu.memory_space<vmem>>, vector<8x1xf32>
    %c0_24 = arith.constant 0 : index
    %c0_25 = arith.constant 0 : index
    %29 = vector.load %arg4[%c0_24, %c0_25] : memref<8x1xf32, #tpu.memory_space<vmem>>, vector<8x1xf32>
    %30 = arith.maximumf %27, %28 : vector<8x1xf32>
    %31 = arith.subf %27, %30 : vector<8x1xf32>
    %32 = math.exp %31 : vector<8x1xf32>
    %33 = arith.subf %28, %30 : vector<8x1xf32>
    %34 = math.exp %33 : vector<8x1xf32>
    %35 = arith.addf %32, %34 : vector<8x1xf32>
    %36 = math.log %35 : vector<8x1xf32>
    %37 = arith.addf %30, %36 : vector<8x1xf32>
    %38 = arith.subf %27, %37 : vector<8x1xf32>
    %39 = arith.mulf %29, %38 : vector<8x1xf32>
    %cst_26 = arith.constant 1.000000e+00 : f32
    %40 = vector.broadcast %cst_26 : f32 to vector<8x1xf32>
    %41 = arith.subf %40, %29 : vector<8x1xf32>
    %42 = arith.subf %28, %37 : vector<8x1xf32>
    %43 = arith.mulf %41, %42 : vector<8x1xf32>
    %44 = arith.addf %39, %43 : vector<8x1xf32>
    %c8_i32 = arith.constant 8 : i32
    %45 = arith.muli %arg0, %c8_i32 : i32
    %46 = tpu.iota {dimensions = array<i32: 0>} : vector<8x1xi32>
    %47 = vector.broadcast %45 : i32 to vector<8x1xi32>
    %48 = arith.addi %47, %46 : vector<8x1xi32>
    %c8_i32_27 = arith.constant 8 : i32
    %49 = vector.broadcast %c8_i32_27 : i32 to vector<8x1xi32>
    %50 = arith.cmpi slt, %48, %49 : vector<8x1xi32>
    %cst_28 = arith.constant 0.000000e+00 : f32
    %51 = vector.broadcast %cst_28 : f32 to vector<8x1xf32>
    %52 = arith.select %50, %44, %51 : vector<8x1xi1>, vector<8x1xf32>
    %53 = vector.shape_cast %52 : vector<8x1xf32> to vector<1x8x1xf32>
    %cst_29 = arith.constant dense<0.000000e+00> : vector<1xf32>
    %54 = vector.multi_reduction <add>, %53, %cst_29 [1, 2] : vector<1x8x1xf32> to vector<1xf32>
    %55 = vector.shape_cast %54 : vector<1xf32> to vector<1x1x1xf32>
    %56 = vector.extract %55[0, 0, 0] : f32 from vector<1x1x1xf32>
    %57 = vector.broadcast %56 : f32 to vector<1x8x128xf32>
    %c0_30 = arith.constant 0 : index
    %c0_31 = arith.constant 0 : index
    %c0_32 = arith.constant 0 : index
    %58 = vector.load %arg12[%c0_30, %c0_31, %c0_32] : memref<1x8x128xf32, #tpu.memory_space<vmem>>, vector<1x8x128xf32>
    tpu.vector_store %arg12[%c0_30, %c0_31, %c0_32], %57 {strides = array<i32>} : memref<1x8x128xf32, #tpu.memory_space<vmem>>, vector<1x8x128xf32>,
    return
  }
  func.func @transform_0(%arg0: i32) -> (i32, i32) {
    %c0_i32 = arith.constant 0 : i32
    %c0_i32_0 = arith.constant 0 : i32
    return %arg0, %c0_i32 : i32, i32
  }
  func.func @transform_1(%arg0: i32) -> (i32, i32) {
    %c0_i32 = arith.constant 0 : i32
    %c0_i32_0 = arith.constant 0 : i32
    return %arg0, %c0_i32 : i32, i32
  }
  func.func @transform_2(%arg0: i32) -> (i32, i32) {
    %c0_i32 = arith.constant 0 : i32
    %c0_i32_0 = arith.constant 0 : i32
    return %arg0, %c0_i32 : i32, i32
  }
  func.func @transform_3(%arg0: i32) -> (i32, i32) {
    %c0_i32 = arith.constant 0 : i32
    %c0_i32_0 = arith.constant 0 : i32
    return %arg0, %c0_i32 : i32, i32
  }
  func.func @transform_4(%arg0: i32) -> (i32, i32) {
    %c0_i32 = arith.constant 0 : i32
    %c0_i32_0 = arith.constant 0 : i32
    %c0_i32_1 = arith.constant 0 : i32
    return %c0_i32, %c0_i32_0 : i32, i32
  }
  func.func @transform_5(%arg0: i32) -> (i32, i32) {
    %c0_i32 = arith.constant 0 : i32
    %c0_i32_0 = arith.constant 0 : i32
    %c0_i32_1 = arith.constant 0 : i32
    return %c0_i32, %c0_i32_0 : i32, i32
  }
  func.func @transform_6(%arg0: i32) -> (i32, i32) {
    %c0_i32 = arith.constant 0 : i32
    %c0_i32_0 = arith.constant 0 : i32
    %c0_i32_1 = arith.constant 0 : i32
    return %c0_i32, %c0_i32_0 : i32, i32
  }
  func.func @transform_7(%arg0: i32) -> (i32, i32) {
    %c0_i32 = arith.constant 0 : i32
    %c0_i32_0 = arith.constant 0 : i32
    %c0_i32_1 = arith.constant 0 : i32
    return %c0_i32, %c0_i32_0 : i32, i32
  }
  func.func @transform_8(%arg0: i32) -> (i32, i32) {
    %c0_i32 = arith.constant 0 : i32
    %c0_i32_0 = arith.constant 0 : i32
    %c0_i32_1 = arith.constant 0 : i32
    return %c0_i32, %c0_i32_0 : i32, i32
  }
  func.func @transform_9(%arg0: i32) -> (i32, i32) {
    %c0_i32 = arith.constant 0 : i32
    %c0_i32_0 = arith.constant 0 : i32
    %c0_i32_1 = arith.constant 0 : i32
    return %c0_i32, %c0_i32_0 : i32, i32
  }
  func.func @transform_10(%arg0: i32) -> (i32, i32) {
    %c0_i32 = arith.constant 0 : i32
    %c0_i32_0 = arith.constant 0 : i32
    %c0_i32_1 = arith.constant 0 : i32
    return %c0_i32, %c0_i32_0 : i32, i32
  }
  func.func @transform_11(%arg0: i32) -> (i32, i32, i32) {
    %c0_i32 = arith.constant 0 : i32
    %c0_i32_0 = arith.constant 0 : i32
    %c0_i32_1 = arith.constant 0 : i32
    return %arg0, %c0_i32, %c0_i32_0 : i32, i32, i32
  }
}

</mosaic_0001>

<llo_original>
// kernel: tpu_custom_call.1
$region0: #{tpu_custom_call.1}
  #allocation0 [shape = 'u32[]', space=smem, size = 0x4, offset = 0x4, fixed_abs, tag = 'smem constant byte address 0x4 - core index']
  #allocation1 [shape = 'u32[144,128]{1,0:T(1,128)}', space=vmem, size = 0x12000, scoped, tag = 'internal scratch']
  #allocation2 [shape = 'f32[1,1]{1,0:T(1,128)S(1)}', space=vmem, size = 0x200, scoped, tag = 'scoped memory for tpu_custom_call.1']
  %s0 = inlined_call_operand.vmem [shape: bf16[8,16], index: 0, kind: input, shape index: {}]
  %s1 = inlined_call_operand.vmem [shape: bf16[8,4], index: 1, kind: input, shape index: {}]
  %s2 = inlined_call_operand.vmem [shape: f32[8,1], index: 2, kind: input, shape index: {}]
  %s3 = inlined_call_operand.vmem [shape: f32[8,1], index: 3, kind: input, shape index: {}]
  %s4 = inlined_call_operand.vmem [shape: bf16[16,128], index: 4, kind: input, shape index: {}]
  %s5 = inlined_call_operand.vmem [shape: bf16[4,128], index: 5, kind: input, shape index: {}]
  %s6 = inlined_call_operand.vmem [shape: f32[1,128], index: 6, kind: input, shape index: {}]
  %s7 = inlined_call_operand.hbm [shape: bf16[128,128], index: 7, kind: input, shape index: {}]
  %s8 = inlined_call_operand.vmem [shape: f32[1,128], index: 8, kind: input, shape index: {}]
  %s9 = inlined_call_operand.vmem [shape: f32[1,128], index: 9, kind: input, shape index: {}]
  %s10 = inlined_call_operand.<no memory space> [shape: f32[1,1], index: 10, kind: input, shape index: {}]
  %s11 = inlined_call_operand.hbm [shape: f32[1,8,128], index: 11, kind: output, shape index: {}]
  %s12 = sld [smem:[#allocation0]]
  $region58: #{tpu_custom_call.1} parent=0
    _
  %s14 = ssub.s32 1, %s12
  %s15 = scalar_select 0, %s14, %s12
  %v16 = vstv %s10
  %17 = vst [vmem:[#allocation2] sm:$0x1] %v16
  $region1: #{tpu_custom_call.1} parent=0
    #allocation3 [shape = 'u8[32768]{0}', space=vmem, size = 0x8000, scoped, tag = 'input window, operand 7, single buffered']
    #allocation4 [shape = 's32[1]{0}', space=sflag, size = 0x4, scoped, tag = 'scoped memory for tpu_custom_call.1']
    #allocation5 [shape = 's32[1]{0}', space=sflag, size = 0x4, scoped, tag = 'scoped memory for tpu_custom_call.1']
    #allocation6 [shape = 'u8[4096]{0}', space=vmem, size = 0x1000, scoped, tag = 'output window, operand 0, single buffered']
    %18 = vsyncpa [#allocation4], 0
    %19 = vsyncpa [#allocation5], 0
    // Predicated region
    $region2: #{tpu_custom_call.1} parent=1 // pred_check
      _
    $region3: #{tpu_custom_call.1} parent=1 // pred_check_branch
      %21 = sbr.rel (0) target = $region5
    $region4: #{tpu_custom_call.1} parent=1 // pred_region
      _
    $region5: #{tpu_custom_call.1} parent=1 // pred_fallthru
      _
    // Predicated region
    $region6: #{tpu_custom_call.1} parent=1 // pred_check
      _
    $region7: #{tpu_custom_call.1} parent=1 // pred_check_branch
      %23 = sbr.rel (0) target = $region9
    $region8: #{tpu_custom_call.1} parent=1 // pred_region
      _
    $region9: #{tpu_custom_call.1} parent=1 // pred_fallthru
      _
    // Predicated region
    $region10: #{tpu_custom_call.1} parent=1 // pred_check
      _
    $region11: #{tpu_custom_call.1} parent=1 // pred_check_branch
      %25 = sbr.rel (0) target = $region13
    $region12: #{tpu_custom_call.1} parent=1 // pred_region
      _
    $region13: #{tpu_custom_call.1} parent=1 // pred_fallthru
      _
    // Predicated region
    $region14: #{tpu_custom_call.1} parent=1 // pred_check
      _
    $region15: #{tpu_custom_call.1} parent=1 // pred_check_branch
      %27 = sbr.rel (0) target = $region17
    $region16: #{tpu_custom_call.1} parent=1 // pred_region
      _
    $region17: #{tpu_custom_call.1} parent=1 // pred_fallthru
      _
    // Predicated region
    $region18: #{tpu_custom_call.1} parent=1 // pred_check
      _
    $region19: #{tpu_custom_call.1} parent=1 // pred_check_branch
      %29 = sbr.rel (0) target = $region21
    $region20: #{tpu_custom_call.1} parent=1 // pred_region
      _
    $region21: #{tpu_custom_call.1} parent=1 // pred_fallthru
      _
    // Predicated region
    $region22: #{tpu_custom_call.1} parent=1 // pred_check
      _
    $region23: #{tpu_custom_call.1} parent=1 // pred_check_branch
      %31 = sbr.rel (0) target = $region25
    $region24: #{tpu_custom_call.1} parent=1 // pred_region
      _
    $region25: #{tpu_custom_call.1} parent=1 // pred_fallthru
      _
    // Predicated region
    $region26: #{tpu_custom_call.1} parent=1 // pred_check
      _
    $region27: #{tpu_custom_call.1} parent=1 // pred_check_branch
      %33 = sbr.rel (0) target = $region29
    $region28: #{tpu_custom_call.1} parent=1 // pred_region
      _
    $region29: #{tpu_custom_call.1} parent=1 // pred_fallthru
      _
    // Predicated region
    $region30: #{tpu_custom_call.1} parent=1 // pred_check
      _
    $region31: #{tpu_custom_call.1} parent=1 // pred_check_branch
      %35 = sbr.rel (0) target = $region33
    $region32: #{tpu_custom_call.1} parent=1 // pred_region
      %s37 = ssub.s32 1024, 1024
      %38 = vsyncadd [#allocation4], %s37
      %s39 = sshll.u32 [#allocation3], 4
      %s40 = int_to_ptr.vmem [resolvable:$true] %s39
      %45 = dma.hbm_to_vmem [thread:$0]  %s7, 1024, %s40, [#allocation4], 64, 64, 4
    $region33: #{tpu_custom_call.1} parent=1 // pred_fallthru
      _
    // Predicated region
    $region34: #{tpu_custom_call.1} parent=1 // pred_check
      _
    $region35: #{tpu_custom_call.1} parent=1 // pred_check_branch
      %47 = sbr.rel (0) target = $region37
    $region36: #{tpu_custom_call.1} parent=1 // pred_region
      _
    $region37: #{tpu_custom_call.1} parent=1 // pred_fallthru
      _
    // Predicated region
    $region38: #{tpu_custom_call.1} parent=1 // pred_check
      _
    $region39: #{tpu_custom_call.1} parent=1 // pred_check_branch
      %49 = sbr.rel (0) target = $region41
    $region40: #{tpu_custom_call.1} parent=1 // pred_region
      _
    $region41: #{tpu_custom_call.1} parent=1 // pred_fallthru
      _
    // Predicated region
    $region42: #{tpu_custom_call.1} parent=1 // pred_check
      _
    $region43: #{tpu_custom_call.1} parent=1 // pred_check_branch
      %51 = sbr.rel (0) target = $region45
    $region44: #{tpu_custom_call.1} parent=1 // pred_region
      _
    $region45: #{tpu_custom_call.1} parent=1 // pred_fallthru
      _
    // Predicated region
    $region46: #{tpu_custom_call.1} parent=1 // pred_check
      _
    $region47: #{tpu_custom_call.1} parent=1 // pred_check_branch
      %53 = sbr.rel (0) target = $region49
    $region48: #{tpu_custom_call.1} parent=1 // pred_region
      %54 = dma.done [#allocation4], 1024
    $region49: #{tpu_custom_call.1} parent=1 // pred_fallthru
      _
    %v56 = vld [vmem:[%s0] sm:$0xf]
    %v57 = vld [vmem:[%s4] sm:$0xf]
    %v58 = vld [vmem:[%s4 + $0x4] sm:$0xf]
    %v59 = vld [vmem:[%s1] sm:$0xf]
    %v60 = vld [vmem:[%s5] sm:$0x3]
    %vm61 = vcmask 31744
    %v63 = vsel %vm61, %v59, 0
    %vm65 = vcmask 1041408
    %v67 = vsel %vm65, %v60, 0
    %69 = vmatprep.subr.bf16.mxu0 0
    %70 = vmatpush1.bf16.msra.mxu0 0
    %71 = vmatprep.subr.bf16.mxu0 0
    %72 = vmatpush1.bf16.msra.mxu0 0
    %73 = vmatprep.subr.bf16.mxu0 0
    %74 = vmatpush1.bf16.msra.mxu0 0
    %75 = vmatprep.subr.bf16.mxu0 0
    %76 = vmatpush1.bf16.msra.mxu0 0
    %77 = vmatprep.subr.bf16.mxu0 0
    %78 = vmatpush1.bf16.msra.mxu0 0
    %79 = vmatprep.subr.bf16.mxu0 0
    %80 = vmatpush1.bf16.msra.mxu0 0
    %81 = vmatprep.subr.bf16.mxu0 0
    %82 = vmatpush1.bf16.msra.mxu0 0
    %83 = vmatprep.subr.bf16.mxu0 0
    %84 = vmatpush1.bf16.msra.mxu0 %v67
    %85 = vmatprep.subr.bf16.mxu0 0
    %86 = vmatpush2.bf16.msra.mxu0 0
    %87 = vmatprep.subr.bf16.mxu0 0
    %88 = vmatpush2.bf16.msra.mxu0 0
    %89 = vmatprep.subr.bf16.mxu0 0
    %90 = vmatpush2.bf16.msra.mxu0 0
    %91 = vmatprep.subr.bf16.mxu0 0
    %92 = vmatpush2.bf16.msra.mxu0 0
    %93 = vmatprep.subr.bf16.mxu0 0
    %94 = vmatpush2.bf16.msra.mxu0 0
    %95 = vmatprep.subr.bf16.mxu0 0
    %96 = vmatpush2.bf16.msra.mxu0 0
    %97 = vmatprep.subr.bf16.mxu0 0
    %98 = vmatpush2.bf16.msra.mxu0 0
    %99 = vmatprep.subr.bf16.mxu0 0
    %100 = vmatpush2.bf16.msra.mxu0 0
    %101 = vmatprep.mubr.bf16.mxu0 0
    %102 = vmatmul.mubr.bf16.gmra.mxu0 %v63
    %v103 = vpop.f32.mrf.mxu0
    %v104 = vadd.f32 0.0, %v103
    %v105 = vpop.f32.mrf.mxu0
    %v106 = vpop.f32.mrf.mxu0
    %v107 = vpop.f32.mrf.mxu0
    %108 = vdwg.mxu0
    %v111 = vunpack.c.l.b16 %v57
    %v112 = vunpack.c.l.b16 %v58
    %v113 = vpack.c.b16 %v112, %v111
    %vm115 = vcmask 130048
    %v117 = vsel %vm115, %v56, 0
    %119 = vmatprep.subr.bf16.mxu0 0
    %120 = vmatpush1.bf16.msra.mxu0 0
    %121 = vmatprep.subr.bf16.mxu0 0
    %122 = vmatpush1.bf16.msra.mxu0 0
    %123 = vmatprep.subr.bf16.mxu0 0
    %124 = vmatpush1.bf16.msra.mxu0 0
    %125 = vmatprep.subr.bf16.mxu0 0
    %126 = vmatpush1.bf16.msra.mxu0 0
    %127 = vmatprep.subr.bf16.mxu0 0
    %128 = vmatpush1.bf16.msra.mxu0 0
    %129 = vmatprep.subr.bf16.mxu0 0
    %130 = vmatpush1.bf16.msra.mxu0 0
    %131 = vmatprep.subr.bf16.mxu0 0
    %132 = vmatpush1.bf16.msra.mxu0 0
    %133 = vmatprep.subr.bf16.mxu0 0
    %134 = vmatpush1.bf16.msra.mxu0 %v113
    %135 = vmatprep.subr.bf16.mxu0 0
    %136 = vmatpush2.bf16.msra.mxu0 0
    %137 = vmatprep.subr.bf16.mxu0 0
    %138 = vmatpush2.bf16.msra.mxu0 0
    %139 = vmatprep.subr.bf16.mxu0 0
    %140 = vmatpush2.bf16.msra.mxu0 0
    %141 = vmatprep.subr.bf16.mxu0 0
    %142 = vmatpush2.bf16.msra.mxu0 0
    %143 = vmatprep.subr.bf16.mxu0 0
    %144 = vmatpush2.bf16.msra.mxu0 0
    %145 = vmatprep.subr.bf16.mxu0 0
    %146 = vmatpush2.bf16.msra.mxu0 0
    %147 = vmatprep.subr.bf16.mxu0 0
    %148 = vmatpush2.bf16.msra.mxu0 0
    %149 = vmatprep.subr.bf16.mxu0 0
    %150 = vmatpush2.bf16.msra.mxu0 0
    %151 = vmatprep.mubr.bf16.mxu0 0
    %152 = vmatmul.mubr.bf16.gmra.mxu0 %v117
    %v153 = vpop.f32.mrf.mxu0
    %v154 = vadd.f32 %v104, %v153
    %v155 = vpop.f32.mrf.mxu0
    %v156 = vpop.f32.mrf.mxu0
    %v157 = vpop.f32.mrf.mxu0
    %158 = vdwg.mxu0
    %v159 = vld [vmem:[%s6] sm:$0x1]
    %v161 = vlaneseq
    %v162 = vshrl.u32 %v161, 7
    %v163 = vsub.s32 0, %v162
    %v164 = vrot.slane %v159, %v163
    %v166 = vadd.f32 %v154, %v164
    %v167 = vmax.f32 %v166, 0.0
    %v168 = vpack.c.bf16 %v167, %v167
    %v169 = vld [vmem:[#allocation3] sm:$0xf]
    %v170 = vld [vmem:[#allocation3 + $0x4] sm:$0xf]
    %v171 = vld [vmem:[#allocation3 + $0x8] sm:$0xf]
    %v172 = vld [vmem:[#allocation3 + $0xc] sm:$0xf]
    %v173 = vld [vmem:[#allocation3 + $0x10] sm:$0xf]
    %v174 = vld [vmem:[#allocation3 + $0x14] sm:$0xf]
    %v175 = vld [vmem:[#allocation3 + $0x18] sm:$0xf]
    %v176 = vld [vmem:[#allocation3 + $0x1c] sm:$0xf]
    %v177 = vld [vmem:[#allocation3 + $0x20] sm:$0xf]
    %v178 = vld [vmem:[#allocation3 + $0x24] sm:$0xf]
    %v179 = vld [vmem:[#allocation3 + $0x28] sm:$0xf]
    %v180 = vld [vmem:[#allocation3 + $0x2c] sm:$0xf]
    %v181 = vld [vmem:[#allocation3 + $0x30] sm:$0xf]
    %v182 = vld [vmem:[#allocation3 + $0x34] sm:$0xf]
    %v183 = vld [vmem:[#allocation3 + $0x38] sm:$0xf]
    %v184 = vld [vmem:[#allocation3 + $0x3c] sm:$0xf]
    %v185 = vld [vmem:[%s8] sm:$0x1]
    %v187 = vlaneseq
    %v188 = vshrl.u32 %v187, 7
    %v189 = vsub.s32 0, %v188
    %v190 = vrot.slane %v185, %v189
    %v208 = vunpack.c.l.b16 %v169
    %v209 = vunpack.c.l.b16 %v170
    %v210 = vunpack.c.l.b16 %v171
    %v211 = vunpack.c.l.b16 %v172
    %v212 = vunpack.c.l.b16 %v173
    %v213 = vunpack.c.l.b16 %v174
    %v214 = vunpack.c.l.b16 %v175
    %v215 = vunpack.c.l.b16 %v176
    %v216 = vunpack.c.l.b16 %v177
    %v217 = vunpack.c.l.b16 %v178
    %v218 = vunpack.c.l.b16 %v179
    %v219 = vunpack.c.l.b16 %v180
    %v220 = vunpack.c.l.b16 %v181
    %v221 = vunpack.c.l.b16 %v182
    %v222 = vunpack.c.l.b16 %v183
    %v223 = vunpack.c.l.b16 %v184
    %v224 = vpack.c.b16 %v209, %v208
    %v225 = vpack.c.b16 %v211, %v210
    %v226 = vpack.c.b16 %v213, %v212
    %v227 = vpack.c.b16 %v215, %v214
    %v228 = vpack.c.b16 %v217, %v216
    %v229 = vpack.c.b16 %v219, %v218
    %v230 = vpack.c.b16 %v221, %v220
    %v231 = vpack.c.b16 %v223, %v222
    %240 = vmatprep.subr.bf16.mxu0 0
    %241 = vmatpush1.bf16.msra.mxu0 %v231
    %242 = vmatprep.subr.bf16.mxu0 0
    %243 = vmatpush1.bf16.msra.mxu0 %v230
    %244 = vmatprep.subr.bf16.mxu0 0
    %245 = vmatpush1.bf16.msra.mxu0 %v229
    %246 = vmatprep.subr.bf16.mxu0 0
    %247 = vmatpush1.bf16.msra.mxu0 %v228
    %248 = vmatprep.subr.bf16.mxu0 0
    %249 = vmatpush1.bf16.msra.mxu0 %v227
    %250 = vmatprep.subr.bf16.mxu0 0
    %251 = vmatpush1.bf16.msra.mxu0 %v226
    %252 = vmatprep.subr.bf16.mxu0 0
    %253 = vmatpush1.bf16.msra.mxu0 %v225
    %254 = vmatprep.subr.bf16.mxu0 0
    %255 = vmatpush1.bf16.msra.mxu0 %v224
    %256 = vmatprep.subr.bf16.mxu0 0
    %257 = vmatpush2.bf16.msra.mxu0 0
    %258 = vmatprep.subr.bf16.mxu0 0
    %259 = vmatpush2.bf16.msra.mxu0 0
    %260 = vmatprep.subr.bf16.mxu0 0
    %261 = vmatpush2.bf16.msra.mxu0 0
    %262 = vmatprep.subr.bf16.mxu0 0
    %263 = vmatpush2.bf16.msra.mxu0 0
    %264 = vmatprep.subr.bf16.mxu0 0
    %265 = vmatpush2.bf16.msra.mxu0 0
    %266 = vmatprep.subr.bf16.mxu0 0
    %267 = vmatpush2.bf16.msra.mxu0 0
    %268 = vmatprep.subr.bf16.mxu0 0
    %269 = vmatpush2.bf16.msra.mxu0 0
    %270 = vmatprep.subr.bf16.mxu0 0
    %271 = vmatpush2.bf16.msra.mxu0 0
    %272 = vmatprep.mubr.bf16.mxu0 0
    %273 = vmatmul.mubr.bf16.gmra.mxu0 %v168
    %v274 = vpop.f32.mrf.mxu0
    %v275 = vadd.f32 %v190, %v274
    %v276 = vpop.f32.mrf.mxu0
    %v277 = vpop.f32.mrf.mxu0
    %v278 = vpop.f32.mrf.mxu0
    %279 = vdwg.mxu0
    %v280 = vmax.f32 %v275, 0.0
    %v281 = vld [vmem:[%s9] sm:$0x1]
    %v283 = vlaneseq
    %v284 = vshrl.u32 %v283, 7
    %v285 = vsub.s32 0, %v284
    %v286 = vrot.slane %v281, %v285
    %v288 = vmul.f32 %v280, %v286
    %289 = vadd.xlane.f32.xlu0 %v288
    %v290 = vpop.xlane.xlu0 %289
    %v291 = vld [vmem:[#allocation2] sm:$0x1]
    %v293 = vlaneseq
    %v294 = vshrl.u32 %v293, 7
    %v295 = vsub.s32 0, %v294
    %v296 = vrot.slane %v291, %v295
    %v298 = vadd.f32 %v290, %v296
    %v299 = vld [vmem:[%s2] sm:$0xff]
    %v300 = vld [vmem:[%s3] sm:$0xff]
    %v301 = vmax.f32 %v298, %v299
    %v302 = vsub.f32 %v298, %v301
    %v303 = vmul.f32 %v302, 1.442695
    %v304 = vpow.pop %v303
    %v305 = vsub.f32 %v299, %v301
    %v306 = vmul.f32 %v305, 1.442695
    %v307 = vpow.pop %v306
    %v308 = vadd.f32 %v304, %v307
    %v309 = vlog2.pop %v308
    %v310 = vmul.f32 %v309, 0.6931472
    %v311 = vadd.f32 %v301, %v310
    %v312 = vsub.f32 %v298, %v311
    %v313 = vmul.f32 %v300, %v312
    %v314 = vsub.f32 1.0, %v300
    %v315 = vsub.f32 %v299, %v311
    %v316 = vmul.f32 %v314, %v315
    %v317 = vadd.f32 %v313, %v316
    %s318 = smul.u32 0, 8
    %v319 = vlaneseq
    %v320 = vshrl.u32 %v319, 7
    %v321 = vstv %s318
    %v322 = vadd.s32 %v321, %v320
    %vm323 = vcmp.lt.s32.totalorder %v322, 8
    %v324 = vsel %vm323, %v317, 0.0
    %vm325 = vcmask 7168
    %v326 = vsel %vm325, %v324, 0.0
    %327 = vadd.xlane.f32.xlu0 %v326
    %v328 = vpop.xlane.xlu0 %327
    %v329 = vrot.slane %v328, 4
    %v330 = vadd.f32 %v328, %v329
    %v331 = vrot.slane %v330, 2
    %v332 = vadd.f32 %v330, %v331
    %v333 = vrot.slane %v332, 1
    %v334 = vadd.f32 %v332, %v333
    %s335 = vtos %v334
    %v336 = vstv %s335
    %337 = vst [vmem:[#allocation6] sm:$0xff] %v336
    // Predicated region
    $region50: #{tpu_custom_call.1} parent=1 // pred_check
      _
    $region51: #{tpu_custom_call.1} parent=1 // pred_check_branch
      %339 = sbr.rel (0) target = $region53
    $region52: #{tpu_custom_call.1} parent=1 // pred_region
      %s341 = ssub.s32 128, 128
      %342 = vsyncadd [#allocation5], %s341
      %s344 = sshll.u32 [#allocation6], 4
      %s345 = int_to_ptr.vmem [resolvable:$true] %s344
      %347 = dma.vmem_to_hbm [thread:$0]  %s345, 128, %s11, [#allocation5]
    $region53: #{tpu_custom_call.1} parent=1 // pred_fallthru
      _
    // Predicated region
    $region54: #{tpu_custom_call.1} parent=1 // pred_check
      _
    $region55: #{tpu_custom_call.1} parent=1 // pred_check_branch
      %349 = sbr.rel (0) target = $region57
    $region56: #{tpu_custom_call.1} parent=1 // pred_region
      %350 = dma.done [#allocation5], 128
    $region57: #{tpu_custom_call.1} parent=1 // pred_fallthru
      _
    %351 = vsyncpa [#allocation4], 1
    %352 = vsyncpa [#allocation5], 1

</llo_original>
